<compile_context>
chip_gen: v7x
topology: tpu7x:2x2x1
jax: 0.10.0
libtpu: 0.0.40
codegen_flags: <defaults>
</compile_context>

<pallas_src>
import jax
import jax.numpy as jnp
from jax.experimental import pallas as pl
from jax.experimental.pallas import tpu as pltpu

BN_EPS = 1e-5
NORM_EPS = 1e-12

# Row layout of the packed [8, D] per-feature vector input.
_ROW_BIAS1R, _ROW_G1D, _ROW_B1D, _ROW_G2D, _ROW_B2D, _ROW_G1R, _ROW_B1R, _ROW_W2R = range(8)


def _bn_relu_scale_shift(h, gamma, beta):
    """BatchNorm1d (training mode) + ReLU in fused scale/shift form.

    Per-feature statistics live on [1, D] rows (f32); the full [N, D] tile is
    touched by a single h*scale + shift pass plus the ReLU max.  The one-pass
    variance is clamped to >= 0 to avoid negative values from cancellation.
    """
    mean = jnp.mean(h, axis=0, keepdims=True)
    var = jnp.maximum(jnp.mean(h * h, axis=0, keepdims=True) - mean * mean, 0.0)
    scale = gamma * jax.lax.rsqrt(var + BN_EPS)                 # [1, D]
    shift = beta - mean * scale                                 # [1, D]
    return jnp.maximum(h * scale + shift, 0.0)


def _bn_train(h, gamma, beta):
    # PyTorch-faithful reference form (centered two-pass variance).
    mean = jnp.mean(h, axis=0, keepdims=True)
    var = jnp.mean((h - mean) ** 2, axis=0, keepdims=True)
    return (h - mean) * jax.lax.rsqrt(var + BN_EPS) * gamma + beta


def projection_head_kappa_kernel(
    x_ref,           # [N, D] f32
    wcat_ref,        # [D, 2D] bf16 = concat(w1d, w1r) along the output axis
    w2d_ref,         # [D, D]  bf16
    w3d_ref,         # [D, O]  bf16
    vec_ref,         # [8, D]  f32 packed per-feature vectors (one DMA)
    bias2r_ref,      # [1]     f32 in SMEM
    dir_ref,         # [N, O]
    kappa_ref,       # [N, 1]
):
    row = lambda i: vec_ref[i:i + 1, :]              # static [1, D] slice
    D = wcat_ref.shape[0]

    # One fused MXU pass (bf16 operands, f32 accumulation) feeds both heads.
    xb = x_ref[...].astype(jnp.bfloat16)
    h_cat = jnp.dot(xb, wcat_ref[...], preferred_element_type=jnp.float32)
    h_dir = h_cat[:, :D]                              # lane-aligned slices (D % 128 == 0)
    h_rad = h_cat[:, D:] + row(_ROW_BIAS1R)

    # ---------------- fc_dir path ----------------
    h = _bn_relu_scale_shift(h_dir, row(_ROW_G1D), row(_ROW_B1D))
    h = jnp.dot(h.astype(jnp.bfloat16), w2d_ref[...], preferred_element_type=jnp.float32)
    h = _bn_relu_scale_shift(h, row(_ROW_G2D), row(_ROW_B2D))
    x_dir = jnp.dot(h.astype(jnp.bfloat16), w3d_ref[...], preferred_element_type=jnp.float32)

    # F.normalize(x_dir, dim=1): rsqrt on the EUP instead of sqrt + divide.
    sumsq = jnp.sum(x_dir * x_dir, axis=1, keepdims=True)
    inv = jax.lax.rsqrt(jnp.maximum(sumsq, NORM_EPS * NORM_EPS))
    dir_ref[...] = (x_dir * inv).astype(dir_ref.dtype)

    # ---------------- fc_rad path ----------------
    r = _bn_relu_scale_shift(h_rad, row(_ROW_G1R), row(_ROW_B1R))
    # kappa = r @ w2r + b: a [D,1] matmul wastes the MXU; use a lane reduction.
    kappa = jnp.sum(r * row(_ROW_W2R), axis=1, keepdims=True) + bias2r_ref[0]
    kappa_ref[...] = kappa.astype(kappa_ref.dtype)


def _vmem_capacity_bytes():
    try:
        info = pltpu.get_tpu_info()
        for attr in ("vmem_capacity_bytes", "vmem_size_bytes", "vmem_bytes"):
            v = getattr(info, attr, None)
            if v:
                return int(v)
    except Exception:
        pass
    return 64 << 20  # conservative default: v7x per-TC VMEM


def prepare_params(p):
    """One-time packing / casting of the module parameters (do NOT call per step)."""
    D = p["w1d"].shape[0]
    O = p["w3d"].shape[1]
    assert D % 128 == 0 and O % 128 == 0, (
        "fused dual-head matmul and lane-aligned slices assume D, O multiples of 128"
    )
    wcat = jnp.concatenate([p["w1d"], p["w1r"]], axis=1).astype(jnp.bfloat16)  # [D, 2D]
    vec = jnp.concatenate(
        [
            p["bias1r"],
            p["g1d"], p["b1d"],
            p["g2d"], p["b2d"],
            p["g1r"], p["b1r"],
            p["w2r"].reshape(1, D),
        ],
        axis=0,
    ).astype(jnp.float32)                                                      # [8, D]
    return {
        "wcat": wcat,
        "w2d": p["w2d"].astype(jnp.bfloat16),
        "w3d": p["w3d"].astype(jnp.bfloat16),
        "vec": vec,
        "bias2r": p["bias2r"].reshape((1,)).astype(jnp.float32),
    }


def projection_head_kappa(x, prep):
    """x: [N, D] float32, prep: output of prepare_params.

    Returns (x_dir [N, O] L2-normalized, kappa [N, 1]).
    """
    N, D = x.shape
    O = prep["w3d"].shape[1]

    vmem_inputs = (x, prep["wcat"], prep["w2d"], prep["w3d"], prep["vec"])
    inputs = vmem_inputs + (prep["bias2r"],)

    full = lambda a: pl.BlockSpec(a.shape, lambda: (0,) * a.ndim)
    in_specs = [full(a) for a in vmem_inputs] + [
        pl.BlockSpec(memory_space=pltpu.MemorySpace.SMEM)  # bias2r scalar
    ]
    out_shape = (
        jax.ShapeDtypeStruct((N, O), x.dtype),
        jax.ShapeDtypeStruct((N, 1), jnp.float32),
    )
    out_specs = (
        pl.BlockSpec((N, O), lambda: (0, 0)),
        pl.BlockSpec((N, 1), lambda: (0, 0)),
    )

    in_bytes = sum(int(a.size) * a.dtype.itemsize for a in inputs)
    out_bytes = (N * O + N) * 4
    # Rough f32 intermediates: h_cat [N,2D], two hidden [N,D], x_dir [N,O], r [N,D].
    interm_bytes = 4 * N * (2 * D + 3 * D + 2 * O)
    working_set = in_bytes + out_bytes + interm_bytes

    cap = _vmem_capacity_bytes()
    # TODO(synk): tile N (two-pass BatchNorm) instead of asserting, for large N/D.
    assert working_set < 0.7 * cap, (
        f"working set {working_set} B exceeds ~70% of VMEM ({cap} B); tile N."
    )
    vmem_limit = int(min(0.75 * cap, max(4 << 20, 2 * working_set)))

    cost = pl.CostEstimate(
        flops=int(2 * N * D * (2 * D + D + O) + 12 * N * D),
        transcendentals=int(3 * D + N),
        bytes_accessed=int(in_bytes + out_bytes),
    )

    x_dir, kappa = pl.pallas_call(
        projection_head_kappa_kernel,
        out_shape=out_shape,
        grid=(),
        in_specs=in_specs,
        out_specs=out_specs,
        compiler_params=pltpu.CompilerParams(vmem_limit_bytes=vmem_limit),
        cost_estimate=cost,
    )(*inputs)
    return x_dir, kappa


def make_params(key, hidden_dim, output_dim):
    ks = jax.random.split(key, 12)
    u = lambda k, shape, fan_in: jax.random.uniform(
        k, shape, jnp.float32, -1.0 / jnp.sqrt(fan_in), 1.0 / jnp.sqrt(fan_in)
    )
    D, O = hidden_dim, output_dim
    return {
        # fc_dir: Linear(D,D,bias=False) -> BN -> ReLU -> Linear(D,D,bias=False)
        #         -> BN -> ReLU -> Linear(D,O,bias=False)
        "w1d": u(ks[0], (D, D), D),
        "g1d": jax.random.uniform(ks[1], (1, D), jnp.float32, 0.5, 1.5),
        "b1d": jax.random.uniform(ks[2], (1, D), jnp.float32, -0.1, 0.1),
        "w2d": u(ks[3], (D, D), D),
        "g2d": jax.random.uniform(ks[4], (1, D), jnp.float32, 0.5, 1.5),
        "b2d": jax.random.uniform(ks[5], (1, D), jnp.float32, -0.1, 0.1),
        "w3d": u(ks[6], (D, O), D),
        # fc_rad: Linear(D,D,bias=True) -> BN -> ReLU -> Linear(D,1,bias=True)
        "w1r": u(ks[7], (D, D), D),
        "bias1r": u(ks[8], (1, D), D),
        "g1r": jax.random.uniform(ks[9], (1, D), jnp.float32, 0.5, 1.5),
        "b1r": jax.random.uniform(ks[10], (1, D), jnp.float32, -0.1, 0.1),
        "w2r": u(ks[11], (D, 1), D),
        "bias2r": jnp.zeros((1, 1), jnp.float32),
    }


def reference(x, p, matmul_dtype=jnp.float32):
    """Pure-JAX reference (PyTorch-faithful math); matmul_dtype lets us do an
    apples-to-apples check against the bf16-operand kernel."""
    c = lambda a: a.astype(matmul_dtype)
    mm = lambda a, b: jnp.dot(c(a), c(b), preferred_element_type=jnp.float32)
    h = mm(x, p["w1d"])
    h = jnp.maximum(_bn_train(h, p["g1d"], p["b1d"]), 0.0)
    h = mm(h, p["w2d"])
    h = jnp.maximum(_bn_train(h, p["g2d"], p["b2d"]), 0.0)
    xd = mm(h, p["w3d"])
    xd = xd / jnp.maximum(jnp.linalg.norm(xd, axis=1, keepdims=True), NORM_EPS)
    r = mm(x, p["w1r"]) + p["bias1r"]
    r = jnp.maximum(_bn_train(r, p["g1r"], p["b1r"]), 0.0)
    k = r @ p["w2r"] + p["bias2r"]
    return xd, k


if __name__ == "__main__":
    N, HIDDEN, OUT = 16, 128, 128
    key = jax.random.PRNGKey(0)
    kx, kp = jax.random.split(key)
    x = jax.random.normal(kx, (N, HIDDEN), jnp.float32)
    params = make_params(kp, HIDDEN, OUT)
    prep = prepare_params(params)   # one-time packing / bf16 cast

    x_dir, kappa = projection_head_kappa(x, prep)
    jax.block_until_ready((x_dir, kappa))
    assert x_dir.shape == (N, OUT) and kappa.shape == (N, 1)

    # Apples-to-apples: reference with the same bf16 matmul operands.
    ref_dir_bf, ref_k_bf = reference(x, params, matmul_dtype=jnp.bfloat16)
    assert jnp.allclose(x_dir, ref_dir_bf, atol=2e-3, rtol=2e-3)
    assert jnp.allclose(kappa, ref_k_bf, atol=2e-3, rtol=2e-3)

    # Against the full-f32 PyTorch-faithful reference (bf16-operand tolerance).
    ref_dir, ref_kappa = reference(x, params)
    assert jnp.allclose(x_dir, ref_dir, atol=3e-2, rtol=3e-2)
    assert jnp.allclose(kappa, ref_kappa, atol=3e-2, rtol=3e-2)

    print("KERNEL_OK")
</pallas_src>

<mosaic_0001>
module attributes {stable_mosaic.version = 11 : i64} {
  func.func @projection_head_kappa_kernel(%arg0: memref<16x128xf32, #tpu.memory_space<vmem>>, %arg1: memref<128x256xbf16, #tpu.memory_space<vmem>>, %arg2: memref<128x128xbf16, #tpu.memory_space<vmem>>, %arg3: memref<128x128xbf16, #tpu.memory_space<vmem>>, %arg4: memref<8x128xf32, #tpu.memory_space<vmem>>, %arg5: memref<1xf32, #tpu.memory_space<smem>>, %arg6: memref<16x128xf32, #tpu.memory_space<vmem>>, %arg7: memref<16x1xf32, #tpu.memory_space<vmem>>) attributes {dimension_semantics = [], scalar_prefetch = 0 : i64, scratch_operands = 0 : i64, tpu.core_type = #tpu.core_type<tc>} {
    %c0 = arith.constant 0 : index
    %c0_0 = arith.constant 0 : index
    %0 = vector.load %arg0[%c0, %c0_0] : memref<16x128xf32, #tpu.memory_space<vmem>>, vector<16x128xf32>
    %1 = arith.truncf %0 : vector<16x128xf32> to vector<16x128xbf16>
    %c0_1 = arith.constant 0 : index
    %c0_2 = arith.constant 0 : index
    %2 = vector.load %arg1[%c0_1, %c0_2] : memref<128x256xbf16, #tpu.memory_space<vmem>>, vector<128x256xbf16>
    %cst = arith.constant dense<0.000000e+00> : vector<16x256xf32>
    %3 = tpu.matmul %1, %2, %cst {dimension_numbers = #tpu.dot_dimension_numbers<[1], [0], [0], [1], [0, 0, 1, 1], [], []>} : vector<16x128xbf16>, vector<128x256xbf16>, vector<16x256xf32> -> vector<16x256xf32>
    %4 = vector.extract_strided_slice %3 {offsets = [0, 0], sizes = [16, 128], strides = [1, 1]} : vector<16x256xf32> to vector<16x128xf32>
    %5 = vector.extract_strided_slice %3 {offsets = [0, 128], sizes = [16, 128], strides = [1, 1]} : vector<16x256xf32> to vector<16x128xf32>
    %c0_3 = arith.constant 0 : index
    %c0_4 = arith.constant 0 : index
    %6 = vector.load %arg4[%c0_3, %c0_4] : memref<8x128xf32, #tpu.memory_space<vmem>>, vector<1x128xf32>
    %7 = vector.broadcast %6 : vector<1x128xf32> to vector<16x128xf32>
    %8 = arith.addf %5, %7 : vector<16x128xf32>
    %c1 = arith.constant 1 : index
    %c0_5 = arith.constant 0 : index
    %9 = vector.load %arg4[%c1, %c0_5] : memref<8x128xf32, #tpu.memory_space<vmem>>, vector<1x128xf32>
    %c2 = arith.constant 2 : index
    %c0_6 = arith.constant 0 : index
    %10 = vector.load %arg4[%c2, %c0_6] : memref<8x128xf32, #tpu.memory_space<vmem>>, vector<1x128xf32>
    %cst_7 = arith.constant dense<0.000000e+00> : vector<128xf32>
    %11 = vector.multi_reduction <add>, %4, %cst_7 [0] : vector<16x128xf32> to vector<128xf32>
    %12 = vector.shape_cast %11 : vector<128xf32> to vector<1x128xf32>
    %cst_8 = arith.constant 1.600000e+01 : f32
    %13 = vector.broadcast %cst_8 : f32 to vector<1x128xf32>
    %14 = arith.divf %12, %13 : vector<1x128xf32>
    %15 = arith.mulf %4, %4 : vector<16x128xf32>
    %cst_9 = arith.constant dense<0.000000e+00> : vector<128xf32>
    %16 = vector.multi_reduction <add>, %15, %cst_9 [0] : vector<16x128xf32> to vector<128xf32>
    %17 = vector.shape_cast %16 : vector<128xf32> to vector<1x128xf32>
    %cst_10 = arith.constant 1.600000e+01 : f32
    %18 = vector.broadcast %cst_10 : f32 to vector<1x128xf32>
    %19 = arith.divf %17, %18 : vector<1x128xf32>
    %20 = arith.mulf %14, %14 : vector<1x128xf32>
    %21 = arith.subf %19, %20 : vector<1x128xf32>
    %cst_11 = arith.constant 0.000000e+00 : f32
    %22 = vector.broadcast %cst_11 : f32 to vector<1x128xf32>
    %23 = arith.maximumf %21, %22 : vector<1x128xf32>
    %cst_12 = arith.constant 9.99999974E-6 : f32
    %24 = vector.broadcast %cst_12 : f32 to vector<1x128xf32>
    %25 = arith.addf %23, %24 : vector<1x128xf32>
    %26 = math.rsqrt %25 : vector<1x128xf32>
    %27 = arith.mulf %9, %26 : vector<1x128xf32>
    %28 = arith.mulf %14, %27 : vector<1x128xf32>
    %29 = arith.subf %10, %28 : vector<1x128xf32>
    %30 = vector.broadcast %27 : vector<1x128xf32> to vector<16x128xf32>
    %31 = arith.mulf %4, %30 : vector<16x128xf32>
    %32 = vector.broadcast %29 : vector<1x128xf32> to vector<16x128xf32>
    %33 = arith.addf %31, %32 : vector<16x128xf32>
    %cst_13 = arith.constant 0.000000e+00 : f32
    %34 = vector.broadcast %cst_13 : f32 to vector<16x128xf32>
    %35 = arith.maximumf %33, %34 : vector<16x128xf32>
    %36 = arith.truncf %35 : vector<16x128xf32> to vector<16x128xbf16>
    %c0_14 = arith.constant 0 : index
    %c0_15 = arith.constant 0 : index
    %37 = vector.load %arg2[%c0_14, %c0_15] : memref<128x128xbf16, #tpu.memory_space<vmem>>, vector<128x128xbf16>
    %cst_16 = arith.constant dense<0.000000e+00> : vector<16x128xf32>
    %38 = tpu.matmul %36, %37, %cst_16 {dimension_numbers = #tpu.dot_dimension_numbers<[1], [0], [0], [1], [0, 0, 1, 1], [], []>} : vector<16x128xbf16>, vector<128x128xbf16>, vector<16x128xf32> -> vector<16x128xf32>
    %c3 = arith.constant 3 : index
    %c0_17 = arith.constant 0 : index
    %39 = vector.load %arg4[%c3, %c0_17] : memref<8x128xf32, #tpu.memory_space<vmem>>, vector<1x128xf32>
    %c4 = arith.constant 4 : index
    %c0_18 = arith.constant 0 : index
    %40 = vector.load %arg4[%c4, %c0_18] : memref<8x128xf32, #tpu.memory_space<vmem>>, vector<1x128xf32>
    %cst_19 = arith.constant dense<0.000000e+00> : vector<128xf32>
    %41 = vector.multi_reduction <add>, %38, %cst_19 [0] : vector<16x128xf32> to vector<128xf32>
    %42 = vector.shape_cast %41 : vector<128xf32> to vector<1x128xf32>
    %cst_20 = arith.constant 1.600000e+01 : f32
    %43 = vector.broadcast %cst_20 : f32 to vector<1x128xf32>
    %44 = arith.divf %42, %43 : vector<1x128xf32>
    %45 = arith.mulf %38, %38 : vector<16x128xf32>
    %cst_21 = arith.constant dense<0.000000e+00> : vector<128xf32>
    %46 = vector.multi_reduction <add>, %45, %cst_21 [0] : vector<16x128xf32> to vector<128xf32>
    %47 = vector.shape_cast %46 : vector<128xf32> to vector<1x128xf32>
    %cst_22 = arith.constant 1.600000e+01 : f32
    %48 = vector.broadcast %cst_22 : f32 to vector<1x128xf32>
    %49 = arith.divf %47, %48 : vector<1x128xf32>
    %50 = arith.mulf %44, %44 : vector<1x128xf32>
    %51 = arith.subf %49, %50 : vector<1x128xf32>
    %cst_23 = arith.constant 0.000000e+00 : f32
    %52 = vector.broadcast %cst_23 : f32 to vector<1x128xf32>
    %53 = arith.maximumf %51, %52 : vector<1x128xf32>
    %cst_24 = arith.constant 9.99999974E-6 : f32
    %54 = vector.broadcast %cst_24 : f32 to vector<1x128xf32>
    %55 = arith.addf %53, %54 : vector<1x128xf32>
    %56 = math.rsqrt %55 : vector<1x128xf32>
    %57 = arith.mulf %39, %56 : vector<1x128xf32>
    %58 = arith.mulf %44, %57 : vector<1x128xf32>
    %59 = arith.subf %40, %58 : vector<1x128xf32>
    %60 = vector.broadcast %57 : vector<1x128xf32> to vector<16x128xf32>
    %61 = arith.mulf %38, %60 : vector<16x128xf32>
    %62 = vector.broadcast %59 : vector<1x128xf32> to vector<16x128xf32>
    %63 = arith.addf %61, %62 : vector<16x128xf32>
    %cst_25 = arith.constant 0.000000e+00 : f32
    %64 = vector.broadcast %cst_25 : f32 to vector<16x128xf32>
    %65 = arith.maximumf %63, %64 : vector<16x128xf32>
    %66 = arith.truncf %65 : vector<16x128xf32> to vector<16x128xbf16>
    %c0_26 = arith.constant 0 : index
    %c0_27 = arith.constant 0 : index
    %67 = vector.load %arg3[%c0_26, %c0_27] : memref<128x128xbf16, #tpu.memory_space<vmem>>, vector<128x128xbf16>
    %cst_28 = arith.constant dense<0.000000e+00> : vector<16x128xf32>
    %68 = tpu.matmul %66, %67, %cst_28 {dimension_numbers = #tpu.dot_dimension_numbers<[1], [0], [0], [1], [0, 0, 1, 1], [], []>} : vector<16x128xbf16>, vector<128x128xbf16>, vector<16x128xf32> -> vector<16x128xf32>
    %69 = arith.mulf %68, %68 : vector<16x128xf32>
    %cst_29 = arith.constant dense<0.000000e+00> : vector<16xf32>
    %70 = vector.multi_reduction <add>, %69, %cst_29 [1] : vector<16x128xf32> to vector<16xf32>
    %71 = vector.shape_cast %70 : vector<16xf32> to vector<16x1xf32>
    %cst_30 = arith.constant 1.000000e-24 : f32
    %72 = vector.broadcast %cst_30 : f32 to vector<16x1xf32>
    %73 = arith.maximumf %71, %72 : vector<16x1xf32>
    %74 = math.rsqrt %73 : vector<16x1xf32>
    %75 = vector.broadcast %74 : vector<16x1xf32> to vector<16x128xf32>
    %76 = arith.mulf %68, %75 : vector<16x128xf32>
    %c0_31 = arith.constant 0 : index
    %c0_32 = arith.constant 0 : index
    %77 = vector.load %arg6[%c0_31, %c0_32] : memref<16x128xf32, #tpu.memory_space<vmem>>, vector<16x128xf32>
    tpu.vector_store %arg6[%c0_31, %c0_32], %76 {strides = array<i32>} : memref<16x128xf32, #tpu.memory_space<vmem>>, vector<16x128xf32>,
    %c5 = arith.constant 5 : index
    %c0_33 = arith.constant 0 : index
    %78 = vector.load %arg4[%c5, %c0_33] : memref<8x128xf32, #tpu.memory_space<vmem>>, vector<1x128xf32>
    %c6 = arith.constant 6 : index
    %c0_34 = arith.constant 0 : index
    %79 = vector.load %arg4[%c6, %c0_34] : memref<8x128xf32, #tpu.memory_space<vmem>>, vector<1x128xf32>
    %cst_35 = arith.constant dense<0.000000e+00> : vector<128xf32>
    %80 = vector.multi_reduction <add>, %8, %cst_35 [0] : vector<16x128xf32> to vector<128xf32>
    %81 = vector.shape_cast %80 : vector<128xf32> to vector<1x128xf32>
    %cst_36 = arith.constant 1.600000e+01 : f32
    %82 = vector.broadcast %cst_36 : f32 to vector<1x128xf32>
    %83 = arith.divf %81, %82 : vector<1x128xf32>
    %84 = arith.mulf %8, %8 : vector<16x128xf32>
    %cst_37 = arith.constant dense<0.000000e+00> : vector<128xf32>
    %85 = vector.multi_reduction <add>, %84, %cst_37 [0] : vector<16x128xf32> to vector<128xf32>
    %86 = vector.shape_cast %85 : vector<128xf32> to vector<1x128xf32>
    %cst_38 = arith.constant 1.600000e+01 : f32
    %87 = vector.broadcast %cst_38 : f32 to vector<1x128xf32>
    %88 = arith.divf %86, %87 : vector<1x128xf32>
    %89 = arith.mulf %83, %83 : vector<1x128xf32>
    %90 = arith.subf %88, %89 : vector<1x128xf32>
    %cst_39 = arith.constant 0.000000e+00 : f32
    %91 = vector.broadcast %cst_39 : f32 to vector<1x128xf32>
    %92 = arith.maximumf %90, %91 : vector<1x128xf32>
    %cst_40 = arith.constant 9.99999974E-6 : f32
    %93 = vector.broadcast %cst_40 : f32 to vector<1x128xf32>
    %94 = arith.addf %92, %93 : vector<1x128xf32>
    %95 = math.rsqrt %94 : vector<1x128xf32>
    %96 = arith.mulf %78, %95 : vector<1x128xf32>
    %97 = arith.mulf %83, %96 : vector<1x128xf32>
    %98 = arith.subf %79, %97 : vector<1x128xf32>
    %99 = vector.broadcast %96 : vector<1x128xf32> to vector<16x128xf32>
    %100 = arith.mulf %8, %99 : vector<16x128xf32>
    %101 = vector.broadcast %98 : vector<1x128xf32> to vector<16x128xf32>
    %102 = arith.addf %100, %101 : vector<16x128xf32>
    %cst_41 = arith.constant 0.000000e+00 : f32
    %103 = vector.broadcast %cst_41 : f32 to vector<16x128xf32>
    %104 = arith.maximumf %102, %103 : vector<16x128xf32>
    %c7 = arith.constant 7 : index
    %c0_42 = arith.constant 0 : index
    %105 = vector.load %arg4[%c7, %c0_42] : memref<8x128xf32, #tpu.memory_space<vmem>>, vector<1x128xf32>
    %106 = vector.broadcast %105 : vector<1x128xf32> to vector<16x128xf32>
    %107 = arith.mulf %104, %106 : vector<16x128xf32>
    %cst_43 = arith.constant dense<0.000000e+00> : vector<16xf32>
    %108 = vector.multi_reduction <add>, %107, %cst_43 [1] : vector<16x128xf32> to vector<16xf32>
    %109 = vector.shape_cast %108 : vector<16xf32> to vector<16x1xf32>
    %c0_44 = arith.constant 0 : index
    %110 = memref.load %arg5[%c0_44] : memref<1xf32, #tpu.memory_space<smem>>
    %111 = vector.broadcast %110 : f32 to vector<16x1xf32>
    %112 = arith.addf %109, %111 : vector<16x1xf32>
    %c0_45 = arith.constant 0 : index
    %c0_46 = arith.constant 0 : index
    %113 = vector.load %arg7[%c0_45, %c0_46] : memref<16x1xf32, #tpu.memory_space<vmem>>, vector<16x1xf32>
    tpu.vector_store %arg7[%c0_45, %c0_46], %112 {strides = array<i32>} : memref<16x1xf32, #tpu.memory_space<vmem>>, vector<16x1xf32>,
    return
  }
}

</mosaic_0001>

<llo_original>
// kernel: tpu_custom_call.1
$region0: #{tpu_custom_call.1}
  #allocation0 [shape = 'u32[]', space=smem, size = 0x4, offset = 0x4, fixed_abs, tag = 'smem constant byte address 0x4 - core index']
  #allocation1 [shape = 'u32[144,128]{1,0:T(1,128)}', space=vmem, size = 0x12000, scoped, tag = 'internal scratch']
  #allocation2 [shape = 'f32[1]{0:T(128)S(6)}', space=smem, size = 0x200, scoped, tag = 'scoped memory for tpu_custom_call.1']
  %s0 = inlined_call_operand.hbm [shape: f32[16,128], index: 0, kind: input, shape index: {}]
  %s1 = inlined_call_operand.hbm [shape: bf16[128,256], index: 1, kind: input, shape index: {}]
  %s2 = inlined_call_operand.hbm [shape: bf16[128,128], index: 2, kind: input, shape index: {}]
  %s3 = inlined_call_operand.hbm [shape: bf16[128,128], index: 3, kind: input, shape index: {}]
  %s4 = inlined_call_operand.vmem [shape: f32[8,128], index: 4, kind: input, shape index: {}]
  %s5 = inlined_call_operand.<no memory space> [shape: f32[1], index: 5, kind: input, shape index: {}]
  %s6 = inlined_call_operand.hbm [shape: f32[16,128], index: 6, kind: output, shape index: {0}]
  %s7 = inlined_call_operand.vmem [shape: f32[16,1], index: 7, kind: output, shape index: {1}]
  %8 = xla_tuple %s6, %s7
  %s9 = sld [smem:[#allocation0]]
  $region58: #{tpu_custom_call.1} parent=0
    _
  %s11 = ssub.s32 1, %s9
  %s12 = scalar_select 0, %s11, %s9
  %13 = sst [smem:[#allocation2]] %s5
  $region1: #{tpu_custom_call.1} parent=0
    #allocation3 [shape = 'u8[8192]{0}', space=vmem, size = 0x2000, scoped, tag = 'input window, operand 0, single buffered']
    #allocation4 [shape = 's32[1]{0}', space=sflag, size = 0x4, scoped, tag = 'scoped memory for tpu_custom_call.1']
    #allocation5 [shape = 's32[1]{0}', space=sflag, size = 0x4, scoped, tag = 'scoped memory for tpu_custom_call.1']
    #allocation6 [shape = 'u8[65536]{0}', space=vmem, size = 0x10000, scoped, tag = 'input window, operand 1, single buffered']
    #allocation7 [shape = 's32[1]{0}', space=sflag, size = 0x4, scoped, tag = 'scoped memory for tpu_custom_call.1']
    #allocation8 [shape = 'u8[32768]{0}', space=vmem, size = 0x8000, scoped, tag = 'input window, operand 2, single buffered']
    #allocation9 [shape = 'u8[32768]{0}', space=vmem, size = 0x8000, scoped, tag = 'input window, operand 3, single buffered']
    #allocation10 [shape = 's32[1]{0}', space=sflag, size = 0x4, scoped, tag = 'scoped memory for tpu_custom_call.1']
    #allocation11 [shape = 'u8[8192]{0}', space=vmem, size = 0x2000, scoped, tag = 'output window, operand 0, single buffered']
    %14 = vsyncpa [#allocation4], 0
    %15 = vsyncpa [#allocation7], 0
    %16 = vsyncpa [#allocation10], 0
    %17 = vsyncpa [#allocation5], 0
    // Predicated region
    $region2: #{tpu_custom_call.1} parent=1 // pred_check
      _
    $region3: #{tpu_custom_call.1} parent=1 // pred_check_branch
      %19 = sbr.rel (0) target = $region5
    $region4: #{tpu_custom_call.1} parent=1 // pred_region
      %s21 = ssub.s32 256, 256
      %22 = vsyncadd [#allocation4], %s21
      %s23 = sshll.u32 [#allocation3], 4
      %s24 = int_to_ptr.vmem [resolvable:$true] %s23
      %29 = dma.hbm_to_vmem [thread:$0]  %s0, 256, %s24, [#allocation4], 128, 128, 8
    $region5: #{tpu_custom_call.1} parent=1 // pred_fallthru
      _
    // Predicated region
    $region6: #{tpu_custom_call.1} parent=1 // pred_check
      _
    $region7: #{tpu_custom_call.1} parent=1 // pred_check_branch
      %31 = sbr.rel (0) target = $region9
    $region8: #{tpu_custom_call.1} parent=1 // pred_region
      %s33 = ssub.s32 2048, 2048
      %34 = vsyncadd [#allocation7], %s33
      %s35 = sshll.u32 [#allocation6], 4
      %s36 = int_to_ptr.vmem [resolvable:$true] %s35
      %41 = dma.hbm_to_vmem [thread:$0]  %s1, 2048, %s36, [#allocation7], 128, 128, 8
    $region9: #{tpu_custom_call.1} parent=1 // pred_fallthru
      _
    // Predicated region
    $region10: #{tpu_custom_call.1} parent=1 // pred_check
      _
    $region11: #{tpu_custom_call.1} parent=1 // pred_check_branch
      %43 = sbr.rel (0) target = $region13
    $region12: #{tpu_custom_call.1} parent=1 // pred_region
      %s45 = ssub.s32 1024, 1024
      %46 = vsyncadd [#allocation7], %s45
      %s47 = sshll.u32 [#allocation8], 4
      %s48 = int_to_ptr.vmem [resolvable:$true] %s47
      %53 = dma.hbm_to_vmem [thread:$0]  %s2, 1024, %s48, [#allocation7], 64, 64, 4
    $region13: #{tpu_custom_call.1} parent=1 // pred_fallthru
      _
    // Predicated region
    $region14: #{tpu_custom_call.1} parent=1 // pred_check
      _
    $region15: #{tpu_custom_call.1} parent=1 // pred_check_branch
      %55 = sbr.rel (0) target = $region17
    $region16: #{tpu_custom_call.1} parent=1 // pred_region
      %s57 = ssub.s32 1024, 1024
      %58 = vsyncadd [#allocation10], %s57
      %s59 = sshll.u32 [#allocation9], 4
      %s60 = int_to_ptr.vmem [resolvable:$true] %s59
      %65 = dma.hbm_to_vmem [thread:$0]  %s3, 1024, %s60, [#allocation10], 64, 64, 4
    $region17: #{tpu_custom_call.1} parent=1 // pred_fallthru
      _
    // Predicated region
    $region18: #{tpu_custom_call.1} parent=1 // pred_check
      _
    $region19: #{tpu_custom_call.1} parent=1 // pred_check_branch
      %67 = sbr.rel (0) target = $region21
    $region20: #{tpu_custom_call.1} parent=1 // pred_region
      _
    $region21: #{tpu_custom_call.1} parent=1 // pred_fallthru
      _
    // Predicated region
    $region22: #{tpu_custom_call.1} parent=1 // pred_check
      _
    $region23: #{tpu_custom_call.1} parent=1 // pred_check_branch
      %69 = sbr.rel (0) target = $region25
    $region24: #{tpu_custom_call.1} parent=1 // pred_region
      _
    $region25: #{tpu_custom_call.1} parent=1 // pred_fallthru
      _
    // Predicated region
    $region26: #{tpu_custom_call.1} parent=1 // pred_check
      _
    $region27: #{tpu_custom_call.1} parent=1 // pred_check_branch
      %71 = sbr.rel (0) target = $region29
    $region28: #{tpu_custom_call.1} parent=1 // pred_region
      %72 = dma.done [#allocation4], 256
    $region29: #{tpu_custom_call.1} parent=1 // pred_fallthru
      _
    // Predicated region
    $region30: #{tpu_custom_call.1} parent=1 // pred_check
      _
    $region31: #{tpu_custom_call.1} parent=1 // pred_check_branch
      %74 = sbr.rel (0) target = $region33
    $region32: #{tpu_custom_call.1} parent=1 // pred_region
      %75 = dma.done [#allocation7], 2048
    $region33: #{tpu_custom_call.1} parent=1 // pred_fallthru
      _
    // Predicated region
    $region34: #{tpu_custom_call.1} parent=1 // pred_check
      _
    $region35: #{tpu_custom_call.1} parent=1 // pred_check_branch
      %77 = sbr.rel (0) target = $region37
    $region36: #{tpu_custom_call.1} parent=1 // pred_region
      %78 = dma.done [#allocation7], 1024
    $region37: #{tpu_custom_call.1} parent=1 // pred_fallthru
      _
    // Predicated region
    $region38: #{tpu_custom_call.1} parent=1 // pred_check
      _
    $region39: #{tpu_custom_call.1} parent=1 // pred_check_branch
      %80 = sbr.rel (0) target = $region41
    $region40: #{tpu_custom_call.1} parent=1 // pred_region
      %81 = dma.done [#allocation10], 1024
    $region41: #{tpu_custom_call.1} parent=1 // pred_fallthru
      _
    %v83 = vld [vmem:[#allocation3] sm:$0xff]
    %v84 = vld [vmem:[#allocation3 + $0x8] sm:$0xff]
    %v85 = vpack.c.bf16 %v84, %v83
    %v86 = vld [vmem:[#allocation6] sm:$0xff]
    %v87 = vld [vmem:[#allocation6 + $0x8] sm:$0xff]
    %v88 = vld [vmem:[#allocation6 + $0x10] sm:$0xff]
    %v89 = vld [vmem:[#allocation6 + $0x18] sm:$0xff]
    %v90 = vld [vmem:[#allocation6 + $0x20] sm:$0xff]
    %v91 = vld [vmem:[#allocation6 + $0x28] sm:$0xff]
    %v92 = vld [vmem:[#allocation6 + $0x30] sm:$0xff]
    %v93 = vld [vmem:[#allocation6 + $0x38] sm:$0xff]
    %v94 = vld [vmem:[#allocation6 + $0x40] sm:$0xff]
    %v95 = vld [vmem:[#allocation6 + $0x48] sm:$0xff]
    %v96 = vld [vmem:[#allocation6 + $0x50] sm:$0xff]
    %v97 = vld [vmem:[#allocation6 + $0x58] sm:$0xff]
    %v98 = vld [vmem:[#allocation6 + $0x60] sm:$0xff]
    %v99 = vld [vmem:[#allocation6 + $0x68] sm:$0xff]
    %v100 = vld [vmem:[#allocation6 + $0x70] sm:$0xff]
    %v101 = vld [vmem:[#allocation6 + $0x78] sm:$0xff]
    %v118 = vunpack.c.l.b16 %v86
    %v119 = vunpack.c.h.b16 %v86
    %v120 = vunpack.c.l.b16 %v87
    %v121 = vunpack.c.h.b16 %v87
    %v122 = vunpack.c.l.b16 %v88
    %v123 = vunpack.c.h.b16 %v88
    %v124 = vunpack.c.l.b16 %v89
    %v125 = vunpack.c.h.b16 %v89
    %v126 = vunpack.c.l.b16 %v90
    %v127 = vunpack.c.h.b16 %v90
    %v128 = vunpack.c.l.b16 %v91
    %v129 = vunpack.c.h.b16 %v91
    %v130 = vunpack.c.l.b16 %v92
    %v131 = vunpack.c.h.b16 %v92
    %v132 = vunpack.c.l.b16 %v93
    %v133 = vunpack.c.h.b16 %v93
    %v134 = vunpack.c.l.b16 %v94
    %v135 = vunpack.c.h.b16 %v94
    %v136 = vunpack.c.l.b16 %v95
    %v137 = vunpack.c.h.b16 %v95
    %v138 = vunpack.c.l.b16 %v96
    %v139 = vunpack.c.h.b16 %v96
    %v140 = vunpack.c.l.b16 %v97
    %v141 = vunpack.c.h.b16 %v97
    %v142 = vunpack.c.l.b16 %v98
    %v143 = vunpack.c.h.b16 %v98
    %v144 = vunpack.c.l.b16 %v99
    %v145 = vunpack.c.h.b16 %v99
    %v146 = vunpack.c.l.b16 %v100
    %v147 = vunpack.c.h.b16 %v100
    %v148 = vunpack.c.l.b16 %v101
    %v149 = vunpack.c.h.b16 %v101
    %v150 = vpack.c.b16 %v120, %v118
    %v151 = vpack.c.b16 %v121, %v119
    %v152 = vpack.c.b16 %v124, %v122
    %v153 = vpack.c.b16 %v125, %v123
    %v154 = vpack.c.b16 %v128, %v126
    %v155 = vpack.c.b16 %v129, %v127
    %v156 = vpack.c.b16 %v132, %v130
    %v157 = vpack.c.b16 %v133, %v131
    %v158 = vpack.c.b16 %v136, %v134
    %v159 = vpack.c.b16 %v137, %v135
    %v160 = vpack.c.b16 %v140, %v138
    %v161 = vpack.c.b16 %v141, %v139
    %v162 = vpack.c.b16 %v144, %v142
    %v163 = vpack.c.b16 %v145, %v143
    %v164 = vpack.c.b16 %v148, %v146
    %v165 = vpack.c.b16 %v149, %v147
    %182 = vmatprep.subr.bf16.mxu0 %v151
    %183 = vmatpush1.bf16.msra.mxu0 %v150
    %184 = vmatprep.subr.bf16.mxu0 %v153
    %185 = vmatpush1.bf16.msra.mxu0 %v152
    %186 = vmatprep.subr.bf16.mxu0 %v155
    %187 = vmatpush1.bf16.msra.mxu0 %v154
    %188 = vmatprep.subr.bf16.mxu0 %v157
    %189 = vmatpush1.bf16.msra.mxu0 %v156
    %190 = vmatprep.subr.bf16.mxu0 %v159
    %191 = vmatpush1.bf16.msra.mxu0 %v158
    %192 = vmatprep.subr.bf16.mxu0 %v161
    %193 = vmatpush1.bf16.msra.mxu0 %v160
    %194 = vmatprep.subr.bf16.mxu0 %v163
    %195 = vmatpush1.bf16.msra.mxu0 %v162
    %196 = vmatprep.subr.bf16.mxu0 %v165
    %197 = vmatpush1.bf16.msra.mxu0 %v164
    %198 = vmatprep.subr.bf16.mxu0 0
    %199 = vmatpush1.bf16.msra.mxu0 0
    %200 = vmatprep.subr.bf16.mxu0 0
    %201 = vmatpush1.bf16.msra.mxu0 0
    %202 = vmatprep.subr.bf16.mxu0 0
    %203 = vmatpush1.bf16.msra.mxu0 0
    %204 = vmatprep.subr.bf16.mxu0 0
    %205 = vmatpush1.bf16.msra.mxu0 0
    %206 = vmatprep.subr.bf16.mxu0 0
    %207 = vmatpush1.bf16.msra.mxu0 0
    %208 = vmatprep.subr.bf16.mxu0 0
    %209 = vmatpush1.bf16.msra.mxu0 0
    %210 = vmatprep.subr.bf16.mxu0 0
    %211 = vmatpush1.bf16.msra.mxu0 0
    %212 = vmatprep.subr.bf16.mxu0 0
    %213 = vmatpush1.bf16.msra.mxu0 0
    %214 = vmatprep.mubr.bf16.mxu0 0
    %215 = vmatmul.mubr.bf16.gmra.mrb[0].mxu0 %v85
    %v216 = vpop.f32.mrb[0].mxu0
    %v217 = vadd.f32 0.0, %v216
    %v218 = vpop.f32.mrb[0].mxu0
    %v219 = vadd.f32 0.0, %v218
    %v220 = vpop.f32.mrb[0].mxu0
    %v221 = vadd.f32 0.0, %v220
    %v222 = vpop.f32.mrb[0].mxu0
    %v223 = vadd.f32 0.0, %v222
    %224 = vdwg.mxu0
    %v225 = vld [vmem:[%s4] sm:$0x1]
    %v226 = vlaneseq
    %v227 = vshrl.u32 %v226, 7
    %v228 = vsub.s32 0, %v227
    %v229 = vrot.slane %v225, %v228
    %v230 = vadd.f32 %v219, %v229
    %v231 = vadd.f32 %v223, %v229
    %v232 = vld [vmem:[%s4 + $0x1] sm:$0x1]
    %v233 = vld [vmem:[%s4 + $0x2] sm:$0x1]
    %v234 = vadd.f32 %v217, %v221
    %v235 = vrot.slane %v234, 4
    %v236 = vadd.f32 %v234, %v235
    %v237 = vrot.slane %v236, 2
    %v238 = vadd.f32 %v236, %v237
    %v239 = vrot.slane %v238, 1
    %v240 = vadd.f32 %v238, %v239
    %v241 = vrcp.pop 16.0
    %v242 = vmul.f32 %v240, %v241
    %v243 = vmul.f32 %v217, %v217
    %v244 = vmul.f32 %v221, %v221
    %v245 = vadd.f32 %v243, %v244
    %v246 = vrot.slane %v245, 4
    %v247 = vadd.f32 %v245, %v246
    %v248 = vrot.slane %v247, 2
    %v249 = vadd.f32 %v247, %v248
    %v250 = vrot.slane %v249, 1
    %v251 = vadd.f32 %v249, %v250
    %v252 = vmul.f32 %v251, %v241
    %v253 = vmul.f32 %v242, %v242
    %v254 = vsub.f32 %v252, %v253
    %v255 = vmax.f32 %v254, 0.0
    %v256 = vadd.f32 %v255, 1e-05
    %v257 = vrsqrt.pop %v256
    %v258 = vmul.f32 %v232, %v257
    %v259 = vmul.f32 %v242, %v258
    %v260 = vsub.f32 %v233, %v259
    %v261 = vlaneseq
    %v262 = vshrl.u32 %v261, 7
    %v263 = vsub.s32 0, %v262
    %v264 = vrot.slane %v258, %v263
    %v265 = vmul.f32 %v217, %v264
    %v266 = vmul.f32 %v221, %v264
    %v267 = vlaneseq
    %v268 = vshrl.u32 %v267, 7
    %v269 = vsub.s32 0, %v268
    %v270 = vrot.slane %v260, %v269
    %v271 = vadd.f32 %v265, %v270
    %v272 = vadd.f32 %v266, %v270
    %v273 = vmax.f32 %v271, 0.0
    %v274 = vmax.f32 %v272, 0.0
    %v275 = vpack.c.bf16 %v274, %v273
    %v276 = vld [vmem:[#allocation8] sm:$0xf]
    %v277 = vld [vmem:[#allocation8 + $0x4] sm:$0xf]
    %v278 = vld [vmem:[#allocation8 + $0x8] sm:$0xf]
    %v279 = vld [vmem:[#allocation8 + $0xc] sm:$0xf]
    %v280 = vld [vmem:[#allocation8 + $0x10] sm:$0xf]
    %v281 = vld [vmem:[#allocation8 + $0x14] sm:$0xf]
    %v282 = vld [vmem:[#allocation8 + $0x18] sm:$0xf]
    %v283 = vld [vmem:[#allocation8 + $0x1c] sm:$0xf]
    %v284 = vld [vmem:[#allocation8 + $0x20] sm:$0xf]
    %v285 = vld [vmem:[#allocation8 + $0x24] sm:$0xf]
    %v286 = vld [vmem:[#allocation8 + $0x28] sm:$0xf]
    %v287 = vld [vmem:[#allocation8 + $0x2c] sm:$0xf]
    %v288 = vld [vmem:[#allocation8 + $0x30] sm:$0xf]
    %v289 = vld [vmem:[#allocation8 + $0x34] sm:$0xf]
    %v290 = vld [vmem:[#allocation8 + $0x38] sm:$0xf]
    %v291 = vld [vmem:[#allocation8 + $0x3c] sm:$0xf]
    %v308 = vunpack.c.l.b16 %v276
    %v309 = vunpack.c.l.b16 %v277
    %v310 = vunpack.c.l.b16 %v278
    %v311 = vunpack.c.l.b16 %v279
    %v312 = vunpack.c.l.b16 %v280
    %v313 = vunpack.c.l.b16 %v281
    %v314 = vunpack.c.l.b16 %v282
    %v315 = vunpack.c.l.b16 %v283
    %v316 = vunpack.c.l.b16 %v284
    %v317 = vunpack.c.l.b16 %v285
    %v318 = vunpack.c.l.b16 %v286
    %v319 = vunpack.c.l.b16 %v287
    %v320 = vunpack.c.l.b16 %v288
    %v321 = vunpack.c.l.b16 %v289
    %v322 = vunpack.c.l.b16 %v290
    %v323 = vunpack.c.l.b16 %v291
    %v324 = vpack.c.b16 %v309, %v308
    %v325 = vpack.c.b16 %v311, %v310
    %v326 = vpack.c.b16 %v313, %v312
    %v327 = vpack.c.b16 %v315, %v314
    %v328 = vpack.c.b16 %v317, %v316
    %v329 = vpack.c.b16 %v319, %v318
    %v330 = vpack.c.b16 %v321, %v320
    %v331 = vpack.c.b16 %v323, %v322
    %340 = vmatprep.subr.bf16.mxu0 0
    %341 = vmatpush1.bf16.msra.mxu0 %v324
    %342 = vmatprep.subr.bf16.mxu0 0
    %343 = vmatpush1.bf16.msra.mxu0 %v325
    %344 = vmatprep.subr.bf16.mxu0 0
    %345 = vmatpush1.bf16.msra.mxu0 %v326
    %346 = vmatprep.subr.bf16.mxu0 0
    %347 = vmatpush1.bf16.msra.mxu0 %v327
    %348 = vmatprep.subr.bf16.mxu0 0
    %349 = vmatpush1.bf16.msra.mxu0 %v328
    %350 = vmatprep.subr.bf16.mxu0 0
    %351 = vmatpush1.bf16.msra.mxu0 %v329
    %352 = vmatprep.subr.bf16.mxu0 0
    %353 = vmatpush1.bf16.msra.mxu0 %v330
    %354 = vmatprep.subr.bf16.mxu0 0
    %355 = vmatpush1.bf16.msra.mxu0 %v331
    %356 = vmatprep.subr.bf16.mxu0 0
    %357 = vmatpush1.bf16.msra.mxu0 0
    %358 = vmatprep.subr.bf16.mxu0 0
    %359 = vmatpush1.bf16.msra.mxu0 0
    %360 = vmatprep.subr.bf16.mxu0 0
    %361 = vmatpush1.bf16.msra.mxu0 0
    %362 = vmatprep.subr.bf16.mxu0 0
    %363 = vmatpush1.bf16.msra.mxu0 0
    %364 = vmatprep.subr.bf16.mxu0 0
    %365 = vmatpush1.bf16.msra.mxu0 0
    %366 = vmatprep.subr.bf16.mxu0 0
    %367 = vmatpush1.bf16.msra.mxu0 0
    %368 = vmatprep.subr.bf16.mxu0 0
    %369 = vmatpush1.bf16.msra.mxu0 0
    %370 = vmatprep.subr.bf16.mxu0 0
    %371 = vmatpush1.bf16.msra.mxu0 0
    %372 = vmatprep.mubr.bf16.mxu0 0
    %373 = vmatmul.mubr.bf16.gmra.mrb[0].mxu0 %v275
    %v374 = vpop.f32.mrb[0].mxu0
    %v375 = vadd.f32 0.0, %v374
    %v376 = vpop.f32.mrb[0].mxu0
    %v377 = vpop.f32.mrb[0].mxu0
    %v378 = vadd.f32 0.0, %v377
    %v379 = vpop.f32.mrb[0].mxu0
    %380 = vdwg.mxu0
    %v381 = vld [vmem:[%s4 + $0x3] sm:$0x1]
    %v382 = vld [vmem:[%s4 + $0x4] sm:$0x1]
    %v383 = vadd.f32 %v375, %v378
    %v384 = vrot.slane %v383, 4
    %v385 = vadd.f32 %v383, %v384
    %v386 = vrot.slane %v385, 2
    %v387 = vadd.f32 %v385, %v386
    %v388 = vrot.slane %v387, 1
    %v389 = vadd.f32 %v387, %v388
    %v390 = vmul.f32 %v389, %v241
    %v391 = vmul.f32 %v375, %v375
    %v392 = vmul.f32 %v378, %v378
    %v393 = vadd.f32 %v391, %v392
    %v394 = vrot.slane %v393, 4
    %v395 = vadd.f32 %v393, %v394
    %v396 = vrot.slane %v395, 2
    %v397 = vadd.f32 %v395, %v396
    %v398 = vrot.slane %v397, 1
    %v399 = vadd.f32 %v397, %v398
    %v400 = vmul.f32 %v399, %v241
    %v401 = vmul.f32 %v390, %v390
    %v402 = vsub.f32 %v400, %v401
    %v403 = vmax.f32 %v402, 0.0
    %v404 = vadd.f32 %v403, 1e-05
    %v405 = vrsqrt.pop %v404
    %v406 = vmul.f32 %v381, %v405
    %v407 = vmul.f32 %v390, %v406
    %v408 = vsub.f32 %v382, %v407
    %v409 = vlaneseq
    %v410 = vshrl.u32 %v409, 7
    %v411 = vsub.s32 0, %v410
    %v412 = vrot.slane %v406, %v411
    %v413 = vmul.f32 %v375, %v412
    %v414 = vmul.f32 %v378, %v412
    %v415 = vlaneseq
    %v416 = vshrl.u32 %v415, 7
    %v417 = vsub.s32 0, %v416
    %v418 = vrot.slane %v408, %v417
    %v419 = vadd.f32 %v413, %v418
    %v420 = vadd.f32 %v414, %v418
    %v421 = vmax.f32 %v419, 0.0
    %v422 = vmax.f32 %v420, 0.0
    %v423 = vpack.c.bf16 %v422, %v421
    %v424 = vld [vmem:[#allocation9] sm:$0xf]
    %v425 = vld [vmem:[#allocation9 + $0x4] sm:$0xf]
    %v426 = vld [vmem:[#allocation9 + $0x8] sm:$0xf]
    %v427 = vld [vmem:[#allocation9 + $0xc] sm:$0xf]
    %v428 = vld [vmem:[#allocation9 + $0x10] sm:$0xf]
    %v429 = vld [vmem:[#allocation9 + $0x14] sm:$0xf]
    %v430 = vld [vmem:[#allocation9 + $0x18] sm:$0xf]
    %v431 = vld [vmem:[#allocation9 + $0x1c] sm:$0xf]
    %v432 = vld [vmem:[#allocation9 + $0x20] sm:$0xf]
    %v433 = vld [vmem:[#allocation9 + $0x24] sm:$0xf]
    %v434 = vld [vmem:[#allocation9 + $0x28] sm:$0xf]
    %v435 = vld [vmem:[#allocation9 + $0x2c] sm:$0xf]
    %v436 = vld [vmem:[#allocation9 + $0x30] sm:$0xf]
    %v437 = vld [vmem:[#allocation9 + $0x34] sm:$0xf]
    %v438 = vld [vmem:[#allocation9 + $0x38] sm:$0xf]
    %v439 = vld [vmem:[#allocation9 + $0x3c] sm:$0xf]
    %v456 = vunpack.c.l.b16 %v424
    %v457 = vunpack.c.l.b16 %v425
    %v458 = vunpack.c.l.b16 %v426
    %v459 = vunpack.c.l.b16 %v427
    %v460 = vunpack.c.l.b16 %v428
    %v461 = vunpack.c.l.b16 %v429
    %v462 = vunpack.c.l.b16 %v430
    %v463 = vunpack.c.l.b16 %v431
    %v464 = vunpack.c.l.b16 %v432
    %v465 = vunpack.c.l.b16 %v433
    %v466 = vunpack.c.l.b16 %v434
    %v467 = vunpack.c.l.b16 %v435
    %v468 = vunpack.c.l.b16 %v436
    %v469 = vunpack.c.l.b16 %v437
    %v470 = vunpack.c.l.b16 %v438
    %v471 = vunpack.c.l.b16 %v439
    %v472 = vpack.c.b16 %v457, %v456
    %v473 = vpack.c.b16 %v459, %v458
    %v474 = vpack.c.b16 %v461, %v460
    %v475 = vpack.c.b16 %v463, %v462
    %v476 = vpack.c.b16 %v465, %v464
    %v477 = vpack.c.b16 %v467, %v466
    %v478 = vpack.c.b16 %v469, %v468
    %v479 = vpack.c.b16 %v471, %v470
    %488 = vmatprep.subr.bf16.mxu0 0
    %489 = vmatpush1.bf16.msra.mxu0 %v472
    %490 = vmatprep.subr.bf16.mxu0 0
    %491 = vmatpush1.bf16.msra.mxu0 %v473
    %492 = vmatprep.subr.bf16.mxu0 0
    %493 = vmatpush1.bf16.msra.mxu0 %v474
    %494 = vmatprep.subr.bf16.mxu0 0
    %495 = vmatpush1.bf16.msra.mxu0 %v475
    %496 = vmatprep.subr.bf16.mxu0 0
    %497 = vmatpush1.bf16.msra.mxu0 %v476
    %498 = vmatprep.subr.bf16.mxu0 0
    %499 = vmatpush1.bf16.msra.mxu0 %v477
    %500 = vmatprep.subr.bf16.mxu0 0
    %501 = vmatpush1.bf16.msra.mxu0 %v478
    %502 = vmatprep.subr.bf16.mxu0 0
    %503 = vmatpush1.bf16.msra.mxu0 %v479
    %504 = vmatprep.subr.bf16.mxu0 0
    %505 = vmatpush1.bf16.msra.mxu0 0
    %506 = vmatprep.subr.bf16.mxu0 0
    %507 = vmatpush1.bf16.msra.mxu0 0
    %508 = vmatprep.subr.bf16.mxu0 0
    %509 = vmatpush1.bf16.msra.mxu0 0
    %510 = vmatprep.subr.bf16.mxu0 0
    %511 = vmatpush1.bf16.msra.mxu0 0
    %512 = vmatprep.subr.bf16.mxu0 0
    %513 = vmatpush1.bf16.msra.mxu0 0
    %514 = vmatprep.subr.bf16.mxu0 0
    %515 = vmatpush1.bf16.msra.mxu0 0
    %516 = vmatprep.subr.bf16.mxu0 0
    %517 = vmatpush1.bf16.msra.mxu0 0
    %518 = vmatprep.subr.bf16.mxu0 0
    %519 = vmatpush1.bf16.msra.mxu0 0
    %520 = vmatprep.mubr.bf16.mxu0 0
    %521 = vmatmul.mubr.bf16.gmra.mrb[0].mxu0 %v423
    %v522 = vpop.f32.mrb[0].mxu0
    %v523 = vadd.f32 0.0, %v522
    %v524 = vpop.f32.mrb[0].mxu0
    %v525 = vpop.f32.mrb[0].mxu0
    %v526 = vadd.f32 0.0, %v525
    %v527 = vpop.f32.mrb[0].mxu0
    %528 = vdwg.mxu0
    %v529 = vmul.f32 %v523, %v523
    %v530 = vmul.f32 %v526, %v526
    %531 = vadd.xlane.f32.xlu0 %v529
    %v532 = vpop.xlane.xlu0 %531
    %533 = vadd.xlane.f32.xlu0 %v530
    %v534 = vpop.xlane.xlu0 %533
    %v535 = vmax.f32 %v532, 1e-24
    %v536 = vmax.f32 %v534, 1e-24
    %v537 = vrsqrt.pop %v535
    %v538 = vrsqrt.pop %v536
    %v539 = vmul.f32 %v523, %v537
    %v540 = vmul.f32 %v526, %v538
    %541 = vst [vmem:[#allocation11] sm:$0xff] %v539
    %542 = vst [vmem:[#allocation11 + $0x8] sm:$0xff] %v540
    %v543 = vld [vmem:[%s4 + $0x5] sm:$0x1]
    %v544 = vld [vmem:[%s4 + $0x6] sm:$0x1]
    %v545 = vadd.f32 %v230, %v231
    %v546 = vrot.slane %v545, 4
    %v547 = vadd.f32 %v545, %v546
    %v548 = vrot.slane %v547, 2
    %v549 = vadd.f32 %v547, %v548
    %v550 = vrot.slane %v549, 1
    %v551 = vadd.f32 %v549, %v550
    %v552 = vmul.f32 %v551, %v241
    %v553 = vmul.f32 %v230, %v230
    %v554 = vmul.f32 %v231, %v231
    %v555 = vadd.f32 %v553, %v554
    %v556 = vrot.slane %v555, 4
    %v557 = vadd.f32 %v555, %v556
    %v558 = vrot.slane %v557, 2
    %v559 = vadd.f32 %v557, %v558
    %v560 = vrot.slane %v559, 1
    %v561 = vadd.f32 %v559, %v560
    %v562 = vmul.f32 %v561, %v241
    %v563 = vmul.f32 %v552, %v552
    %v564 = vsub.f32 %v562, %v563
    %v565 = vmax.f32 %v564, 0.0
    %v566 = vadd.f32 %v565, 1e-05
    %v567 = vrsqrt.pop %v566
    %v568 = vmul.f32 %v543, %v567
    %v569 = vmul.f32 %v552, %v568
    %v570 = vsub.f32 %v544, %v569
    %v571 = vlaneseq
    %v572 = vshrl.u32 %v571, 7
    %v573 = vsub.s32 0, %v572
    %v574 = vrot.slane %v568, %v573
    %v575 = vmul.f32 %v230, %v574
    %v576 = vmul.f32 %v231, %v574
    %v577 = vlaneseq
    %v578 = vshrl.u32 %v577, 7
    %v579 = vsub.s32 0, %v578
    %v580 = vrot.slane %v570, %v579
    %v581 = vadd.f32 %v575, %v580
    %v582 = vadd.f32 %v576, %v580
    %v583 = vmax.f32 %v581, 0.0
    %v584 = vmax.f32 %v582, 0.0
    %v585 = vld [vmem:[%s4 + $0x7] sm:$0x1]
    %v586 = vlaneseq
    %v587 = vshrl.u32 %v586, 7
    %v588 = vsub.s32 0, %v587
    %v589 = vrot.slane %v585, %v588
    %v590 = vmul.f32 %v583, %v589
    %v591 = vmul.f32 %v584, %v589
    %592 = vadd.xlane.f32.xlu0 %v590
    %v593 = vpop.xlane.xlu0 %592
    %594 = vadd.xlane.f32.xlu0 %v591
    %v595 = vpop.xlane.xlu0 %594
    %s596 = sld [smem:[#allocation2]]
    %v597 = vstv %s596
    %v598 = vadd.f32 %v593, %v597
    %v599 = vadd.f32 %v595, %v597
    %vm600 = vcmask 7168
    %601 = vst.msk [vmem:[%s7] sm:$0xff] %vm600, %v598
    %602 = vst.msk [vmem:[%s7 + $0x8] sm:$0xff] %vm600, %v599
    // Predicated region
    $region42: #{tpu_custom_call.1} parent=1 // pred_check
      _
    $region43: #{tpu_custom_call.1} parent=1 // pred_check_branch
      %604 = sbr.rel (0) target = $region45
    $region44: #{tpu_custom_call.1} parent=1 // pred_region
      %s606 = ssub.s32 256, 256
      %607 = vsyncadd [#allocation5], %s606
      %s608 = sshll.u32 [#allocation11], 4
      %s609 = int_to_ptr.vmem [resolvable:$true] %s608
      %614 = dma.vmem_to_hbm [thread:$0]  %s609, 256, %s6, [#allocation5], 128, 128, 8
    $region45: #{tpu_custom_call.1} parent=1 // pred_fallthru
      _
    // Predicated region
    $region46: #{tpu_custom_call.1} parent=1 // pred_check
      _
    $region47: #{tpu_custom_call.1} parent=1 // pred_check_branch
      %616 = sbr.rel (0) target = $region49
    $region48: #{tpu_custom_call.1} parent=1 // pred_region
      _
    $region49: #{tpu_custom_call.1} parent=1 // pred_fallthru
      _
    // Predicated region
    $region50: #{tpu_custom_call.1} parent=1 // pred_check
      _
    $region51: #{tpu_custom_call.1} parent=1 // pred_check_branch
      %618 = sbr.rel (0) target = $region53
    $region52: #{tpu_custom_call.1} parent=1 // pred_region
      %619 = dma.done [#allocation5], 256
    $region53: #{tpu_custom_call.1} parent=1 // pred_fallthru
      _
    // Predicated region
    $region54: #{tpu_custom_call.1} parent=1 // pred_check
      _
    $region55: #{tpu_custom_call.1} parent=1 // pred_check_branch
      %621 = sbr.rel (0) target = $region57
    $region56: #{tpu_custom_call.1} parent=1 // pred_region
      _
    $region57: #{tpu_custom_call.1} parent=1 // pred_fallthru
      _
    %622 = vsyncpa [#allocation4], 1
    %623 = vsyncpa [#allocation7], 1
    %624 = vsyncpa [#allocation10], 1
    %625 = vsyncpa [#allocation5], 1

</llo_original>
